<compile_context>
chip_gen: v6e
topology: v6e:2x2x1
jax: 0.10.0
libtpu: 0.0.40
codegen_flags: <defaults>
</compile_context>

<pallas_src>
import jax
import jax.numpy as jnp
from jax.experimental import pallas as pl
from jax.experimental.pallas import tpu as pltpu


def _round_up(x, m):
    return ((x + m - 1) // m) * m


def _choose_block_rows(rows, max_block_rows=512):
    """Pick a (8,128)-legal row-block size; even grid-step count when >1 block."""
    if rows <= 8:
        return max(rows, 1)            # single block equal to the full dim
    nblocks = max(2, pl.cdiv(rows, max_block_rows))
    if nblocks % 2:                    # v7x: 2 TensorCores share the parallel axis
        nblocks += 1
    return _round_up(pl.cdiv(rows, nblocks), 8)


def _adversary_kernel(p_ref, x_ref, y_ref, lab_ref, log_ref):
    # p_ref (SMEM, shape (4,)): [scale, wa, wb, bias] with
    #   scale = 1 + |c|,  wa = w0 + w2,  wb = w1 - w2  (folded Linear(3,1)).
    scale = p_ref[0]
    wa = p_ref[1]
    wb = p_ref[2]
    bias = p_ref[3]

    x = x_ref[...]                       # (bm, lanes) f32
    y = y_ref[...]                       # (bm, lanes) f32

    # sigmoid(u) == 0.5 * tanh(0.5*u) + 0.5  -> one EUP push per element
    # instead of exp + reciprocal/divide.
    s = 0.5 * jnp.tanh((0.5 * scale) * x) + 0.5   # sigmoid((1+|c|) * pred_logits)
    z = s * (wa + y * wb) + bias                  # folded Linear(3,1) over the concat

    log_ref[...] = z
    lab_ref[...] = 0.5 * jnp.tanh(0.5 * z) + 0.5  # sigmoid(z)


def adversary_forward(pred_logits, true_labels, c, fc1_w, fc1_b,
                      *, max_block_rows=512):
    """pred_logits, true_labels: (B, 1) f32.  Returns (labels, logits), each (B, 1)."""
    B = pred_logits.shape[0]
    assert pred_logits.shape == (B, 1) and true_labels.shape == (B, 1)
    assert B >= 1

    # Fold all scalar parameters into one small 1-D SMEM vector.
    w = fc1_w.reshape(-1).astype(jnp.float32)                   # (3,)
    params = jnp.stack([
        1.0 + jnp.abs(c.reshape(-1)[0].astype(jnp.float32)),    # scale
        w[0] + w[2],                                            # wa
        w[1] - w[2],                                            # wb
        fc1_b.reshape(-1)[0].astype(jnp.float32),               # bias
    ])                                                          # (4,)

    x_flat = pred_logits.reshape(-1).astype(jnp.float32)        # (B,) view
    y_flat = true_labels.reshape(-1).astype(jnp.float32)        # (B,) view

    # Lane-dense 2-D view of the flat batch.  When B is a multiple of 128 the
    # reshape is metadata-only (no pad, no copy); prefer a lane width that
    # yields >= 8 rows so vregs are fully occupied.
    lanes = None
    for cand in (512, 256, 128):
        if B % cand == 0 and B // cand >= 8:
            lanes = cand
            break
    if lanes is None:
        for cand in (512, 256, 128):
            if B % cand == 0:
                lanes = cand
                break

    if lanes is not None:
        rows = B // lanes
        x = x_flat.reshape(rows, lanes)
        y = y_flat.reshape(rows, lanes)
        padded = B
    else:
        # Fallback (B not a multiple of 128): pad a < 128-element tail only.
        lanes = 128
        rows = pl.cdiv(B, lanes)
        padded = rows * lanes
        x = jnp.pad(x_flat, (0, padded - B)).reshape(rows, lanes)
        y = jnp.pad(y_flat, (0, padded - B)).reshape(rows, lanes)

    block_rows = _choose_block_rows(rows, max_block_rows)
    grid = (pl.cdiv(rows, block_rows),)          # partial final block is masked

    vec_spec = pl.BlockSpec((block_rows, lanes), lambda i: (i, 0))
    smem_spec = pl.BlockSpec(memory_space=pltpu.MemorySpace.SMEM)

    out_shape = (
        jax.ShapeDtypeStruct((rows, lanes), jnp.float32),  # labels slab
        jax.ShapeDtypeStruct((rows, lanes), jnp.float32),  # logits slab
    )

    n_elems = rows * lanes
    cost = pl.CostEstimate(flops=10 * n_elems,
                           transcendentals=2 * n_elems,
                           bytes_accessed=16 * n_elems)

    labels_slab, logits_slab = pl.pallas_call(
        _adversary_kernel,
        out_shape=out_shape,
        grid=grid,
        in_specs=[
            smem_spec,   # packed scalar params (4,)
            vec_spec,    # pred_logits slab
            vec_spec,    # true_labels slab
        ],
        out_specs=(vec_spec, vec_spec),
        compiler_params=pltpu.CompilerParams(
            dimension_semantics=("parallel",)),
        cost_estimate=cost,
    )(params, x, y)

    labels_flat = labels_slab.reshape(-1)
    logits_flat = logits_slab.reshape(-1)
    if padded != B:                       # strip the fallback tail pad only
        labels_flat = labels_flat[:B]
        logits_flat = logits_flat[:B]
    return labels_flat.reshape(B, 1), logits_flat.reshape(B, 1)


def adversary_reference(pred_logits, true_labels, c, fc1_w, fc1_b):
    """Pure-JAX reference matching the PyTorch forward exactly."""
    s = jax.nn.sigmoid((1.0 + jnp.abs(c)) * pred_logits)
    feats = jnp.concatenate([s, s * true_labels, s * (1.0 - true_labels)], axis=1)
    z = feats @ fc1_w.T + fc1_b
    return jax.nn.sigmoid(z), z


if __name__ == "__main__":
    key = jax.random.PRNGKey(0)
    k_data, k_w, k_b = jax.random.split(key, 3)

    # Parameters: PyTorch Linear-style uniform init (fan_in = 3); c = [1.0].
    c = jnp.array([1.0], dtype=jnp.float32)
    bound = 1.0 / jnp.sqrt(3.0)
    fc1_w = jax.random.uniform(k_w, (1, 3), jnp.float32, -bound, bound)
    fc1_b = jax.random.uniform(k_b, (1,), jnp.float32, -bound, bound)

    fwd = jax.jit(adversary_forward)

    # B=256 exercises the zero-copy (multiple-of-128) path; B=37 the tail-pad
    # fallback.  Both must match the reference.
    for B in (256, 37):
        k_logit, k_label = jax.random.split(jax.random.fold_in(k_data, B))
        pred_logits = jax.random.normal(k_logit, (B, 1), dtype=jnp.float32)
        true_labels = jax.random.bernoulli(k_label, 0.5, (B, 1)).astype(jnp.float32)

        labels_out, logits_out = fwd(pred_logits, true_labels, c, fc1_w, fc1_b)
        labels_out = jax.block_until_ready(labels_out)
        logits_out = jax.block_until_ready(logits_out)

        ref_labels, ref_logits = adversary_reference(
            pred_logits, true_labels, c, fc1_w, fc1_b)
        assert logits_out.shape == (B, 1) and labels_out.shape == (B, 1)
        assert jnp.allclose(logits_out, ref_logits, atol=1e-5, rtol=1e-5)
        assert jnp.allclose(labels_out, ref_labels, atol=1e-5, rtol=1e-5)

    print("KERNEL_OK")
</pallas_src>

<mosaic_0001>
module attributes {stable_mosaic.version = 11 : i64} {
  func.func @_adversary_kernel(%arg0: i32, %arg1: memref<4xf32, #tpu.memory_space<smem>>, %arg2: memref<1x256xf32, #tpu.memory_space<vmem>>, %arg3: memref<1x256xf32, #tpu.memory_space<vmem>>, %arg4: memref<1x256xf32, #tpu.memory_space<vmem>>, %arg5: memref<1x256xf32, #tpu.memory_space<vmem>>) attributes {dimension_semantics = [#tpu.dimension_semantics<parallel>], iteration_bounds = array<i64: 1>, scalar_prefetch = 0 : i64, scratch_operands = 0 : i64, tpu.core_type = #tpu.core_type<tc>, window_params = [{transform_indices = @transform_0, window_bounds = array<i64: 4>}, {transform_indices = @transform_1, window_bounds = array<i64: 1, 256>}, {transform_indices = @transform_2, window_bounds = array<i64: 1, 256>}, {transform_indices = @transform_3, window_bounds = array<i64: 1, 256>}, {transform_indices = @transform_4, window_bounds = array<i64: 1, 256>}]} {
    %c0 = arith.constant 0 : index
    %0 = memref.load %arg1[%c0] : memref<4xf32, #tpu.memory_space<smem>>
    %c1 = arith.constant 1 : index
    %1 = memref.load %arg1[%c1] : memref<4xf32, #tpu.memory_space<smem>>
    %c2 = arith.constant 2 : index
    %2 = memref.load %arg1[%c2] : memref<4xf32, #tpu.memory_space<smem>>
    %c3 = arith.constant 3 : index
    %3 = memref.load %arg1[%c3] : memref<4xf32, #tpu.memory_space<smem>>
    %c0_0 = arith.constant 0 : index
    %c0_1 = arith.constant 0 : index
    %4 = vector.load %arg2[%c0_0, %c0_1] : memref<1x256xf32, #tpu.memory_space<vmem>>, vector<1x256xf32>
    %c0_2 = arith.constant 0 : index
    %c0_3 = arith.constant 0 : index
    %5 = vector.load %arg3[%c0_2, %c0_3] : memref<1x256xf32, #tpu.memory_space<vmem>>, vector<1x256xf32>
    %cst = arith.constant 5.000000e-01 : f32
    %6 = arith.mulf %cst, %0 : f32
    %7 = vector.broadcast %6 : f32 to vector<1x256xf32>
    %8 = arith.mulf %7, %4 : vector<1x256xf32>
    %9 = math.tanh %8 : vector<1x256xf32>
    %cst_4 = arith.constant 5.000000e-01 : f32
    %10 = vector.broadcast %cst_4 : f32 to vector<1x256xf32>
    %11 = arith.mulf %10, %9 : vector<1x256xf32>
    %cst_5 = arith.constant 5.000000e-01 : f32
    %12 = vector.broadcast %cst_5 : f32 to vector<1x256xf32>
    %13 = arith.addf %11, %12 : vector<1x256xf32>
    %14 = vector.broadcast %2 : f32 to vector<1x256xf32>
    %15 = arith.mulf %5, %14 : vector<1x256xf32>
    %16 = vector.broadcast %1 : f32 to vector<1x256xf32>
    %17 = arith.addf %16, %15 : vector<1x256xf32>
    %18 = arith.mulf %13, %17 : vector<1x256xf32>
    %19 = vector.broadcast %3 : f32 to vector<1x256xf32>
    %20 = arith.addf %18, %19 : vector<1x256xf32>
    %c0_6 = arith.constant 0 : index
    %c0_7 = arith.constant 0 : index
    %21 = vector.load %arg5[%c0_6, %c0_7] : memref<1x256xf32, #tpu.memory_space<vmem>>, vector<1x256xf32>
    tpu.vector_store %arg5[%c0_6, %c0_7], %20 {strides = array<i32>} : memref<1x256xf32, #tpu.memory_space<vmem>>, vector<1x256xf32>,
    %cst_8 = arith.constant 5.000000e-01 : f32
    %22 = vector.broadcast %cst_8 : f32 to vector<1x256xf32>
    %23 = arith.mulf %22, %20 : vector<1x256xf32>
    %24 = math.tanh %23 : vector<1x256xf32>
    %cst_9 = arith.constant 5.000000e-01 : f32
    %25 = vector.broadcast %cst_9 : f32 to vector<1x256xf32>
    %26 = arith.mulf %25, %24 : vector<1x256xf32>
    %cst_10 = arith.constant 5.000000e-01 : f32
    %27 = vector.broadcast %cst_10 : f32 to vector<1x256xf32>
    %28 = arith.addf %26, %27 : vector<1x256xf32>
    %c0_11 = arith.constant 0 : index
    %c0_12 = arith.constant 0 : index
    %29 = vector.load %arg4[%c0_11, %c0_12] : memref<1x256xf32, #tpu.memory_space<vmem>>, vector<1x256xf32>
    tpu.vector_store %arg4[%c0_11, %c0_12], %28 {strides = array<i32>} : memref<1x256xf32, #tpu.memory_space<vmem>>, vector<1x256xf32>,
    return
  }
  func.func @transform_0(%arg0: i32) -> i32 {
    %c0_i32 = arith.constant 0 : i32
    %c0_i32_0 = arith.constant 0 : i32
    return %c0_i32 : i32
  }
  func.func @transform_1(%arg0: i32) -> (i32, i32) {
    %c0_i32 = arith.constant 0 : i32
    %c0_i32_0 = arith.constant 0 : i32
    return %arg0, %c0_i32 : i32, i32
  }
  func.func @transform_2(%arg0: i32) -> (i32, i32) {
    %c0_i32 = arith.constant 0 : i32
    %c0_i32_0 = arith.constant 0 : i32
    return %arg0, %c0_i32 : i32, i32
  }
  func.func @transform_3(%arg0: i32) -> (i32, i32) {
    %c0_i32 = arith.constant 0 : i32
    %c0_i32_0 = arith.constant 0 : i32
    return %arg0, %c0_i32 : i32, i32
  }
  func.func @transform_4(%arg0: i32) -> (i32, i32) {
    %c0_i32 = arith.constant 0 : i32
    %c0_i32_0 = arith.constant 0 : i32
    return %arg0, %c0_i32 : i32, i32
  }
}

</mosaic_0001>

<llo_original>
// kernel: adversary_forward.1
$region0: #{adversary_forward.1}
  #allocation0 [shape = 'u32[]', space=smem, size = 0x4, offset = 0x4, fixed_abs, tag = 'smem constant byte address 0x4 - core index']
  #allocation1 [shape = 'u32[144,128]{1,0:T(1,128)}', space=vmem, size = 0x12000, scoped, tag = 'internal scratch']
  %s0 = inlined_call_operand.vmem [shape: f32[4], index: 0, kind: input, shape index: {}]
  %s1 = inlined_call_operand.vmem [shape: f32[1,256], index: 1, kind: input, shape index: {}]
  %s2 = inlined_call_operand.vmem [shape: f32[1,256], index: 2, kind: input, shape index: {}]
  %s3 = inlined_call_operand.hbm [shape: f32[1,256], index: 3, kind: output, shape index: {0}]
  %s4 = inlined_call_operand.hbm [shape: f32[1,256], index: 4, kind: output, shape index: {1}]
  %5 = xla_tuple %s3, %s4
  %s6 = sld [smem:[#allocation0]]
  $region34: #{adversary_forward.1} parent=0
    _
  %s8 = ssub.s32 1, %s6
  %s9 = scalar_select 0, %s8, %s6
  $region1: #{adversary_forward.1} parent=0
    #allocation2 [shape = 'u8[512]{0}', space=smem, size = 0x200, scoped, tag = 'input window, operand 0, single buffered']
    #allocation3 [shape = 's32[1]{0}', space=sflag, size = 0x4, scoped, tag = 'scoped memory for adversary_forward.1']
    #allocation4 [shape = 's32[1]{0}', space=sflag, size = 0x4, scoped, tag = 'scoped memory for adversary_forward.1']
    #allocation5 [shape = 'u8[1024]{0}', space=vmem, size = 0x400, scoped, tag = 'output window, operand 0, single buffered']
    #allocation6 [shape = 'u8[1024]{0}', space=vmem, size = 0x400, scoped, tag = 'output window, operand 1, single buffered']
    #allocation7 [shape = 's32[1]{0}', space=sflag, size = 0x4, scoped, tag = 'scoped memory for adversary_forward.1']
    %10 = vsyncpa [#allocation4], 0
    %11 = vsyncpa [#allocation3], 0
    %12 = vsyncpa [#allocation7], 0
    // Predicated region
    $region2: #{adversary_forward.1} parent=1 // pred_check
      _
    $region3: #{adversary_forward.1} parent=1 // pred_check_branch
      %14 = sbr.rel (0) target = $region5
    $region4: #{adversary_forward.1} parent=1 // pred_region
      %s16 = ssub.s32 16, 16
      %17 = vsyncadd [#allocation4], %s16
      %s19 = sshll.u32 %s0, 4
      %s20 = int_to_ptr.vmem [resolvable:$true] %s19
      %22 = dma.vmem_to_smem %s20, 16, [#allocation2], [#allocation4]
    $region5: #{adversary_forward.1} parent=1 // pred_fallthru
      _
    // Predicated region
    $region6: #{adversary_forward.1} parent=1 // pred_check
      _
    $region7: #{adversary_forward.1} parent=1 // pred_check_branch
      %24 = sbr.rel (0) target = $region9
    $region8: #{adversary_forward.1} parent=1 // pred_region
      _
    $region9: #{adversary_forward.1} parent=1 // pred_fallthru
      _
    // Predicated region
    $region10: #{adversary_forward.1} parent=1 // pred_check
      _
    $region11: #{adversary_forward.1} parent=1 // pred_check_branch
      %26 = sbr.rel (0) target = $region13
    $region12: #{adversary_forward.1} parent=1 // pred_region
      _
    $region13: #{adversary_forward.1} parent=1 // pred_fallthru
      _
    // Predicated region
    $region14: #{adversary_forward.1} parent=1 // pred_check
      _
    $region15: #{adversary_forward.1} parent=1 // pred_check_branch
      %28 = sbr.rel (0) target = $region17
    $region16: #{adversary_forward.1} parent=1 // pred_region
      %29 = dma.done [#allocation4], 16
    $region17: #{adversary_forward.1} parent=1 // pred_fallthru
      _
    %30 = sfence
    %s31 = sld [smem:[#allocation2]]
    %s32 = sld [smem:[#allocation2 + $0x1]]
    %s33 = sld [smem:[#allocation2 + $0x2]]
    %s34 = sld [smem:[#allocation2 + $0x3]]
    %v35 = vld [vmem:[%s1] sm:$0x3]
    %v36 = vld [vmem:[%s2] sm:$0x3]
    %s37 = smul.f32 %s31, 0.5
    %v38 = vstv %s37
    %v39 = vmul.f32 %v38, %v35
    %v40 = vtanh.pop %v39
    %v41 = vmul.f32 %v40, 0.5
    %v42 = vadd.f32 %v41, 0.5
    %v43 = vstv %s33
    %v44 = vmul.f32 %v36, %v43
    %v45 = vstv %s32
    %v46 = vadd.f32 %v45, %v44
    %v47 = vmul.f32 %v42, %v46
    %v48 = vstv %s34
    %v49 = vadd.f32 %v47, %v48
    %v50 = vlaneseq
    %vm51 = vcmp.ge.s32.totalorder %v50, 0
    %vm52 = vcmp.lt.s32.totalorder %v50, 256
    %vm53 = vmand %vm51, %vm52
    %54 = vst.msk [vmem:[#allocation6] sm:$0x3] %vm53, %v49
    %v55 = vmul.f32 %v49, 0.5
    %v56 = vtanh.pop %v55
    %v57 = vmul.f32 %v56, 0.5
    %v58 = vadd.f32 %v57, 0.5
    %59 = vst.msk [vmem:[#allocation5] sm:$0x3] %vm53, %v58
    // Predicated region
    $region18: #{adversary_forward.1} parent=1 // pred_check
      _
    $region19: #{adversary_forward.1} parent=1 // pred_check_branch
      %61 = sbr.rel (0) target = $region21
    $region20: #{adversary_forward.1} parent=1 // pred_region
      %s63 = ssub.s32 32, 32
      %64 = vsyncadd [#allocation3], %s63
      %s66 = sshll.u32 [#allocation5], 4
      %s67 = int_to_ptr.vmem [resolvable:$true] %s66
      %69 = dma.vmem_to_hbm [thread:$0]  %s67, 32, %s3, [#allocation3]
    $region21: #{adversary_forward.1} parent=1 // pred_fallthru
      _
    // Predicated region
    $region22: #{adversary_forward.1} parent=1 // pred_check
      _
    $region23: #{adversary_forward.1} parent=1 // pred_check_branch
      %71 = sbr.rel (0) target = $region25
    $region24: #{adversary_forward.1} parent=1 // pred_region
      %s73 = ssub.s32 32, 32
      %74 = vsyncadd [#allocation7], %s73
      %s76 = sshll.u32 [#allocation6], 4
      %s77 = int_to_ptr.vmem [resolvable:$true] %s76
      %79 = dma.vmem_to_hbm [thread:$0]  %s77, 32, %s4, [#allocation7]
    $region25: #{adversary_forward.1} parent=1 // pred_fallthru
      _
    // Predicated region
    $region26: #{adversary_forward.1} parent=1 // pred_check
      _
    $region27: #{adversary_forward.1} parent=1 // pred_check_branch
      %81 = sbr.rel (0) target = $region29
    $region28: #{adversary_forward.1} parent=1 // pred_region
      %82 = dma.done [#allocation3], 32
    $region29: #{adversary_forward.1} parent=1 // pred_fallthru
      _
    // Predicated region
    $region30: #{adversary_forward.1} parent=1 // pred_check
      _
    $region31: #{adversary_forward.1} parent=1 // pred_check_branch
      %84 = sbr.rel (0) target = $region33
    $region32: #{adversary_forward.1} parent=1 // pred_region
      %85 = dma.done [#allocation7], 32
    $region33: #{adversary_forward.1} parent=1 // pred_fallthru
      _
    %86 = vsyncpa [#allocation3], 1
    %87 = vsyncpa [#allocation7], 1
    %88 = vsyncpa [#allocation4], 1

</llo_original>
